<compile_context>
chip_gen: v7x
topology: tpu7x:2x2x1
jax: 0.10.0
libtpu: 0.0.40
codegen_flags: <defaults>
</compile_context>

<pallas_src>
import math
import functools

import jax
import jax.numpy as jnp
import numpy as np
from jax.experimental import pallas as pl
from jax.experimental.pallas import tpu as pltpu


_VMEM = pl.BlockSpec(memory_space=pltpu.MemorySpace.VMEM)
_SMEM = pl.BlockSpec(memory_space=pltpu.MemorySpace.SMEM)
_BN_EPS = 1e-5
# tap order matches weight layout: t = kh*3 + kw, (dh, dw) = (kh-1, kw-1)
_TAPS = tuple((dh, dw) for dh in (-1, 0, 1) for dw in (-1, 0, 1))


# -----------------------------------------------------------------------------
# pltpu.roll direction probe (we assume jnp.roll semantics; verify at runtime
# with a one-vreg kernel so a semantics mismatch can never corrupt results).
# Must be called OUTSIDE jit.
# -----------------------------------------------------------------------------
_ROLL_SIGN_CACHE = None


def roll_sign():
    """+1 if pltpu.roll(x, s, ax) == jnp.roll(x, s, ax), else -1."""
    global _ROLL_SIGN_CACHE
    if _ROLL_SIGN_CACHE is None:
        def k(x_ref, o_ref):
            o_ref[...] = pltpu.roll(x_ref[...], shift=1, axis=1)

        x = jnp.tile(jax.lax.iota(jnp.float32, 128)[None, :], (8, 1))
        y = pl.pallas_call(
            k, out_shape=jax.ShapeDtypeStruct((8, 128), jnp.float32),
            in_specs=[_VMEM], out_specs=_VMEM)(x)
        _ROLL_SIGN_CACHE = 1 if int(jax.device_get(y)[0, 0]) == 127 else -1
    return _ROLL_SIGN_CACHE


# -----------------------------------------------------------------------------
# Fused RRDB kernel
# -----------------------------------------------------------------------------
def _make_rrdb_kernel(N, H, W, F, sign):
    M = N * H * W
    inv_m = 1.0 / float(M)
    half = F // 2

    def kernel(x_ref, alphas_ref, s_ref, w_ref, p_ref, o_ref):
        x0 = x_ref[...]                                           # (F, M) f32

        # Border-validity masks, one (1, M) 0/1 f32 per off-center tap.
        # Computed once from iota and reused by all 9 conv blocks.
        m_idx = jax.lax.broadcasted_iota(jnp.int32, (1, M), 1)
        w_idx = m_idx % W
        h_idx = (m_idx // W) % H
        masks = []
        for dh, dw in _TAPS:
            conds = []
            if dh == -1:
                conds.append(h_idx > 0)
            if dh == 1:
                conds.append(h_idx < H - 1)
            if dw == -1:
                conds.append(w_idx > 0)
            if dw == 1:
                conds.append(w_idx < W - 1)
            m = None
            for c in conds:
                m = c if m is None else jnp.logical_and(m, c)
            masks.append(None if m is None else m.astype(jnp.float32))

        def taps_col(src):
            """(F, M) source -> (9F, M) bf16: nine rolled+masked taps stacked
            along the contraction/sublane axis (all chunks 8-row aligned)."""
            cols = []
            for t, (dh, dw) in enumerate(_TAPS):
                d = dh * W + dw                # want src[m + d] at lane m
                s = src if d == 0 else pltpu.roll(
                    src, shift=(sign * -d) % M, axis=1)
                if masks[t] is not None:
                    s = s * masks[t]
                cols.append(s)
            return jnp.concatenate(cols, axis=0).astype(jnp.bfloat16)

        def mm(wi, col):
            """(F, 9F) weight chunk @ (9F, M) column -> (F, M) f32 (bf16 MXU)."""
            return jnp.dot(w_ref[wi].astype(jnp.bfloat16), col,
                           preferred_element_type=jnp.float32)

        def bn_act(acc, pi, ai):
            """conv-bias + training-mode BatchNorm2d (two-pass variance,
            affine folded into one per-channel scale) + optional PReLU."""
            pb = p_ref[pi]                                        # (F, 4)
            bias, gamma, beta = pb[:, 0:1], pb[:, 1:2], pb[:, 2:3]
            acc = acc + bias
            mean = jnp.sum(acc, axis=1, keepdims=True) * inv_m
            c = acc - mean
            var = jnp.sum(c * c, axis=1, keepdims=True) * inv_m
            y = c * (gamma * jax.lax.rsqrt(var + _BN_EPS)) + beta
            if ai is not None:                                    # PReLU, 1 slope
                a = alphas_ref[ai]
                y = jnp.where(y >= 0.0, y, a * y)
            return y

        def rdb(xin, r):
            # weight chunks for rdb r: [conv1|x, conv2|x, conv2|x1, conv3|x2x1]
            col_x = taps_col(xin)
            # conv1: only rows [0:half] are real outputs; rows [half:F] stay 0.
            x1 = bn_act(mm(4 * r + 0, col_x), 3 * r + 0, 2 * r + 0)
            col_x1 = taps_col(x1)
            # conv2(cat[x1, x]): two aligned matmuls instead of a channel concat.
            x2 = bn_act(mm(4 * r + 1, col_x) + mm(4 * r + 2, col_x1),
                        3 * r + 1, 2 * r + 1)
            # cat[x2, x1]: rows [0:half]=x2, [half:F]=x1 via one sublane roll.
            x21 = x2 + pltpu.roll(x1, shift=half, axis=0)
            x3 = bn_act(mm(4 * r + 3, taps_col(x21)), 3 * r + 2, None)
            return x3 + xin                                       # RDB residual

        y = rdb(x0, 0)
        y = rdb(y, 1)
        y = rdb(y, 2)
        # RRDB epilogue: inputs_scales * x + outputs_scales * out (per channel).
        o_ref[...] = s_ref[:, 0:1] * x0 + s_ref[:, 1:2] * y

    return kernel


# -----------------------------------------------------------------------------
# Wrapper: parameter packing + NCHW <-> (C, M) plumbing at the call boundary
# -----------------------------------------------------------------------------
def _pack_w(w_hwio, cpad):
    """(3,3,cin,cout) HWIO -> (cpad, 9*cpad), element [co, (kh*3+kw)*cpad + ci]."""
    _, _, cin, cout = w_hwio.shape
    w = jnp.transpose(w_hwio, (3, 0, 1, 2))                       # (cout,3,3,cin)
    w = jnp.pad(w, ((0, cpad - cout), (0, 0), (0, 0), (0, cpad - cin)))
    return w.reshape(cpad, 9 * cpad)


def rrdblock_forward(params, x_nchw, sign=1):
    N, C, H, W = x_nchw.shape
    F = int(params["s_in"].shape[0])
    half = F // 2
    assert C == F, "RRDBlock residual math requires in_channels == filters"
    assert F % 8 == 0, "channel-on-sublane layout assumes filters % 8 == 0"
    M = N * H * W

    # NCHW -> channel-major (C, N*H*W): channels on sublanes, spatial on lanes.
    x2d = jnp.transpose(x_nchw, (1, 0, 2, 3)).reshape(C, M)

    w_chunks, p_chunks, alphas = [], [], []
    for rdb_name in ("rdb1", "rdb2", "rdb3"):
        rp = params[rdb_name]
        # alphas indexing below assumes PReLU on conv1/conv2 only (as in module).
        assert rp["conv1"]["activate"] and rp["conv2"]["activate"] \
            and not rp["conv3"]["activate"]
        w2 = rp["conv2"]["w"]          # (3,3,half+F,half): ch [0:half]=x1, [half:]=x
        w_chunks += [_pack_w(rp["conv1"]["w"], F),        # conv1 | source x
                     _pack_w(w2[:, :, half:, :], F),      # conv2 | source x
                     _pack_w(w2[:, :, :half, :], F),      # conv2 | source x1
                     _pack_w(rp["conv3"]["w"], F)]        # conv3 | source [x2;x1]
        for cname in ("conv1", "conv2", "conv3"):
            cp = rp[cname]
            pad = (0, F - cp["b"].shape[0])
            p_chunks.append(jnp.stack(
                [jnp.pad(cp["b"], pad), jnp.pad(cp["gamma"], pad),
                 jnp.pad(cp["beta"], pad), jnp.zeros((F,), jnp.float32)],
                axis=1))                                          # (F, 4)
        alphas += [rp["conv1"]["a"], rp["conv2"]["a"]]

    w_slab = jnp.stack(w_chunks)                                  # (12, F, 9F)
    p_slab = jnp.stack(p_chunks)                                  # (9, F, 4)
    s_slab = jnp.stack([params["s_in"], params["s_out"]], axis=1)  # (F, 2)
    alphas = jnp.stack(alphas).astype(jnp.float32)                # (6,) -> SMEM

    # TODO(synk): for activations that exceed VMEM, add a lane-tiled grid over M
    # (dimension_semantics=("parallel",) to shard across v7x's two TensorCores)
    # with a two-phase cross-tile BatchNorm reduction and 3x3 halo exchange,
    # keeping the tiny weight/param slabs resident via constant index_maps.
    # The monolithic kernel is right-sized for this demo (<1 MiB working set).
    out2d = pl.pallas_call(
        _make_rrdb_kernel(N, H, W, F, sign),
        out_shape=jax.ShapeDtypeStruct((F, M), jnp.float32),
        in_specs=[_VMEM, _SMEM, _VMEM, _VMEM, _VMEM],
        out_specs=_VMEM,
        compiler_params=pltpu.CompilerParams(
            vmem_limit_bytes=32 * 1024 * 1024),
    )(x2d, alphas, s_slab, w_slab, p_slab)

    return jnp.transpose(out2d.reshape(F, N, H, W), (1, 0, 2, 3))  # back to NCHW


# -----------------------------------------------------------------------------
# Parameter construction (mirrors __init__ of the torch module)
# -----------------------------------------------------------------------------
def init_conv_block(key, cin, cout, activate=True):
    # xavier_normal_ on (cout, cin, 3, 3): std = sqrt(2 / (9*cin + 9*cout))
    std = math.sqrt(2.0 / (9 * cin + 9 * cout))
    return dict(
        w=std * jax.random.normal(key, (3, 3, cin, cout), jnp.float32),  # HWIO
        b=jnp.zeros((cout,), jnp.float32),         # Conv2D bias init zeros
        gamma=jnp.ones((cout,), jnp.float32),      # BatchNorm2d weight
        beta=jnp.zeros((cout,), jnp.float32),      # BatchNorm2d bias
        a=jnp.zeros((), jnp.float32),              # PReLU(num_parameters=1, init=0)
        activate=activate,
    )


def init_rdb(key, in_channels, filters):
    k1, k2, k3 = jax.random.split(key, 3)
    return dict(
        conv1=init_conv_block(k1, in_channels, filters // 2),
        conv2=init_conv_block(k2, in_channels + filters // 2, filters // 2),
        conv3=init_conv_block(k3, filters, filters, activate=False),
    )


def init_rrdb(key, in_channels, filters):
    assert in_channels == filters and filters % 2 == 0
    k1, k2, k3 = jax.random.split(key, 3)
    return dict(
        rdb1=init_rdb(k1, in_channels, filters),
        rdb2=init_rdb(k2, filters, filters),
        rdb3=init_rdb(k3, filters, filters),
        s_in=jnp.full((filters,), 1.0, jnp.float32),   # ones(1,F,1,1) * beta_input
        s_out=jnp.full((filters,), 0.5, jnp.float32),  # ones(1,F,1,1) * beta_output
    )


# -----------------------------------------------------------------------------
# Pure-JAX reference (lax.conv, matmul precision matched to the kernel)
# -----------------------------------------------------------------------------
def _conv_block_ref(p, x):
    y = jax.lax.conv_general_dilated(
        x.astype(jnp.bfloat16), p["w"].astype(jnp.bfloat16),
        window_strides=(1, 1), padding="SAME",
        dimension_numbers=("NHWC", "HWIO", "NHWC"),
        preferred_element_type=jnp.float32)
    y = y + p["b"].reshape(1, 1, 1, -1)
    mean = jnp.mean(y, axis=(0, 1, 2), keepdims=True)
    var = jnp.mean((y - mean) ** 2, axis=(0, 1, 2), keepdims=True)
    y = (y - mean) * jax.lax.rsqrt(var + _BN_EPS)
    y = y * p["gamma"].reshape(1, 1, 1, -1) + p["beta"].reshape(1, 1, 1, -1)
    if p["activate"]:
        y = jnp.where(y >= 0.0, y, p["a"] * y)
    return y


def _rdb_ref(p, x):
    x1 = _conv_block_ref(p["conv1"], x)
    x2 = _conv_block_ref(p["conv2"], jnp.concatenate([x1, x], axis=-1))
    x3 = _conv_block_ref(p["conv3"], jnp.concatenate([x2, x1], axis=-1))
    return x3 + x


def _rrdb_ref(p, x_nchw):
    x = jnp.transpose(x_nchw, (0, 2, 3, 1))
    y = _rdb_ref(p["rdb3"], _rdb_ref(p["rdb2"], _rdb_ref(p["rdb1"], x)))
    y = (p["s_in"].reshape(1, 1, 1, -1) * x
         + p["s_out"].reshape(1, 1, 1, -1) * y)
    return jnp.transpose(y, (0, 3, 1, 2))


# -----------------------------------------------------------------------------
if __name__ == "__main__":
    key = jax.random.PRNGKey(0)
    k_param, k_x = jax.random.split(key)

    # RRDBlock's residual adds / per-channel scales require in_channels == filters.
    N, C, H, W = 2, 8, 16, 16
    filters = 8

    params = init_rrdb(k_param, C, filters)
    x = jax.random.normal(k_x, (N, C, H, W), jnp.float32)   # PyTorch NCHW input

    sign = roll_sign()                      # probe pltpu.roll direction (outside jit)
    fwd = jax.jit(functools.partial(rrdblock_forward, params, sign=sign))
    out = jax.block_until_ready(fwd(x))

    ref = jax.block_until_ready(_rrdb_ref(params, x))
    np.testing.assert_allclose(np.asarray(out), np.asarray(ref),
                               atol=5e-3, rtol=5e-3)

    assert out.shape == (N, filters, H, W)
    print("KERNEL_OK")
</pallas_src>

<mosaic_0001>
module attributes {stable_mosaic.version = 11 : i64} {
  func.func @k(%arg0: memref<8x128xf32, #tpu.memory_space<vmem>>, %arg1: memref<8x128xf32, #tpu.memory_space<vmem>>) attributes {dimension_semantics = [], scalar_prefetch = 0 : i64, scratch_operands = 0 : i64, tpu.core_type = #tpu.core_type<tc>} {
    %c0 = arith.constant 0 : index
    %c0_0 = arith.constant 0 : index
    %0 = vector.load %arg0[%c0, %c0_0] : memref<8x128xf32, #tpu.memory_space<vmem>>, vector<8x128xf32>
    %c1_i32 = arith.constant 1 : i32
    %1 = tpu.dynamic_rotate %0 by %c1_i32 dim 1 : vector<8x128xf32>, i32 -> vector<8x128xf32>
    %c0_1 = arith.constant 0 : index
    %c0_2 = arith.constant 0 : index
    %2 = vector.load %arg1[%c0_1, %c0_2] : memref<8x128xf32, #tpu.memory_space<vmem>>, vector<8x128xf32>
    tpu.vector_store %arg1[%c0_1, %c0_2], %1 {strides = array<i32>} : memref<8x128xf32, #tpu.memory_space<vmem>>, vector<8x128xf32>,
    return
  }
}

</mosaic_0001>

<llo_original>
// kernel: tpu_custom_call.1
$region0: #{tpu_custom_call.1}
  #allocation0 [shape = 'u32[]', space=smem, size = 0x4, offset = 0x4, fixed_abs, tag = 'smem constant byte address 0x4 - core index']
  #allocation1 [shape = 'u32[144,128]{1,0:T(1,128)}', space=vmem, size = 0x12000, scoped, tag = 'internal scratch']
  %s0 = inlined_call_operand.hbm [shape: f32[8,128], index: 0, kind: input, shape index: {}]
  %s1 = inlined_call_operand.hbm [shape: f32[8,128], index: 1, kind: output, shape index: {}]
  %s2 = sld [smem:[#allocation0]]
  $region18: #{tpu_custom_call.1} parent=0
    _
  %s4 = ssub.s32 1, %s2
  %s5 = scalar_select 0, %s4, %s2
  $region1: #{tpu_custom_call.1} parent=0
    #allocation2 [shape = 'u8[4096]{0}', space=vmem, size = 0x1000, scoped, tag = 'input window, operand 0, single buffered']
    #allocation3 [shape = 's32[1]{0}', space=sflag, size = 0x4, scoped, tag = 'scoped memory for tpu_custom_call.1']
    #allocation4 [shape = 's32[1]{0}', space=sflag, size = 0x4, scoped, tag = 'scoped memory for tpu_custom_call.1']
    #allocation5 [shape = 'u8[4096]{0}', space=vmem, size = 0x1000, scoped, tag = 'output window, operand 0, single buffered']
    %6 = vsyncpa [#allocation3], 0
    %7 = vsyncpa [#allocation4], 0
    // Predicated region
    $region2: #{tpu_custom_call.1} parent=1 // pred_check
      _
    $region3: #{tpu_custom_call.1} parent=1 // pred_check_branch
      %9 = sbr.rel (0) target = $region5
    $region4: #{tpu_custom_call.1} parent=1 // pred_region
      %s11 = ssub.s32 128, 128
      %12 = vsyncadd [#allocation3], %s11
      %s14 = sshll.u32 [#allocation2], 4
      %s15 = int_to_ptr.vmem [resolvable:$true] %s14
      %17 = dma.hbm_to_vmem [thread:$0]  %s0, 128, %s15, [#allocation3]
    $region5: #{tpu_custom_call.1} parent=1 // pred_fallthru
      _
    // Predicated region
    $region6: #{tpu_custom_call.1} parent=1 // pred_check
      _
    $region7: #{tpu_custom_call.1} parent=1 // pred_check_branch
      %19 = sbr.rel (0) target = $region9
    $region8: #{tpu_custom_call.1} parent=1 // pred_region
      %20 = dma.done [#allocation3], 128
    $region9: #{tpu_custom_call.1} parent=1 // pred_fallthru
      _
    %v21 = vld [vmem:[#allocation2] sm:$0xff]
    %22 = vrot.lane.b32.xlu0 %v21, 1
    %v23 = vpop.permute.xlu0 %22
    %24 = vst [vmem:[#allocation5] sm:$0xff] %v23
    // Predicated region
    $region10: #{tpu_custom_call.1} parent=1 // pred_check
      _
    $region11: #{tpu_custom_call.1} parent=1 // pred_check_branch
      %26 = sbr.rel (0) target = $region13
    $region12: #{tpu_custom_call.1} parent=1 // pred_region
      %s28 = ssub.s32 128, 128
      %29 = vsyncadd [#allocation4], %s28
      %s31 = sshll.u32 [#allocation5], 4
      %s32 = int_to_ptr.vmem [resolvable:$true] %s31
      %34 = dma.vmem_to_hbm [thread:$0]  %s32, 128, %s1, [#allocation4]
    $region13: #{tpu_custom_call.1} parent=1 // pred_fallthru
      _
    // Predicated region
    $region14: #{tpu_custom_call.1} parent=1 // pred_check
      _
    $region15: #{tpu_custom_call.1} parent=1 // pred_check_branch
      %36 = sbr.rel (0) target = $region17
    $region16: #{tpu_custom_call.1} parent=1 // pred_region
      %37 = dma.done [#allocation4], 128
    $region17: #{tpu_custom_call.1} parent=1 // pred_fallthru
      _
    %38 = vsyncpa [#allocation3], 1
    %39 = vsyncpa [#allocation4], 1

</llo_original>
